<compile_context>
chip_gen: v7x
topology: tpu7x:2x2x1
jax: 0.10.0
libtpu: 0.0.40
codegen_flags: <defaults>
</compile_context>

<pallas_src>
import functools

import jax
import jax.numpy as jnp
from jax.experimental import pallas as pl
from jax.experimental.pallas import tpu as pltpu


def _round_up(n, m):
    return ((n + m - 1) // m) * m


# ----------------------------------------------------------------------------
# Kernel: whole MLP stack for one batch tile, activations resident in VMEM.
# ----------------------------------------------------------------------------
def _fused_mlp_kernel(*refs, layer_N, use_relu, eps, h_real):
    if layer_N > 0:
        x_ref, w1_ref, p1_ref, wh_ref, ph_ref, o_ref = refs
    else:
        x_ref, w1_ref, p1_ref, o_ref = refs
        wh_ref = ph_ref = None

    inv_h = jnp.float32(1.0 / h_real)  # hoisted: JAX doesn't CSE broadcasts

    def one_layer(a_in, w, p):
        # p rows: 0 = linear bias, 1 = LN gamma, 2 = LN beta  (padded lanes are 0)
        b = p[0:1, :].astype(jnp.float32)
        gamma = p[1:2, :].astype(jnp.float32)
        beta = p[2:3, :].astype(jnp.float32)

        # MXU matmul in native (possibly bf16) dtype, f32 accumulation.
        y = jnp.dot(a_in, w, preferred_element_type=jnp.float32) + b

        # Activation: padded lanes stay exactly 0 (relu(0)=tanh(0)=0, zero bias/cols).
        a = jnp.maximum(y, 0.0) if use_relu else jnp.tanh(y)

        # LayerNorm over the REAL hidden width (biased variance, PyTorch default).
        # Padded lanes of `a` are exactly 0, so both sums need no lane mask and the
        # two reductions are independent (single-pass stats -> shorter XLU chain).
        mean = jnp.sum(a, axis=-1, keepdims=True) * inv_h
        e_a2 = jnp.sum(a * a, axis=-1, keepdims=True) * inv_h
        var = jnp.maximum(e_a2 - mean * mean, 0.0)
        normed = (a - mean) * jax.lax.rsqrt(var + eps)

        # gamma/beta are 0 on padded lanes -> padded output lanes are exactly 0,
        # keeping the next layer's matmul exact.
        return normed * gamma + beta

    # fc1 (cast x to the weight dtype if weights were packed narrower, e.g. bf16).
    x0 = x_ref[...]
    if x0.dtype != w1_ref.dtype:
        x0 = x0.astype(w1_ref.dtype)
    h = one_layer(x0, w1_ref[...], p1_ref[...])

    # fc_h clones: weights stay resident in VMEM, activations in vregs.
    if layer_N > 0:
        w_dtype = wh_ref.dtype
        if layer_N <= 4:
            for l in range(layer_N):                    # static unroll (short stacks)
                h = one_layer(h.astype(w_dtype), wh_ref[l], ph_ref[l])
        else:
            def body(l, carry):                         # bounded live ranges
                return one_layer(carry.astype(w_dtype), wh_ref[l], ph_ref[l])
            h = jax.lax.fori_loop(0, layer_N, body, h)

    o_ref[...] = h.astype(o_ref.dtype)


# ----------------------------------------------------------------------------
# Parameter packing (done once, outside the hot path): pad hidden dim to a
# lane-dense H_pad (multiple of 128), Din only to a sublane multiple of 8,
# stack the hidden-layer clones, fold (bias, gamma, beta) into one slab.
# ----------------------------------------------------------------------------
def pack_mlp_params(params, *, lane=128, weight_dtype=None):
    w1, b1, g1, be1 = params[0]
    Din, H = w1.shape
    layer_N = len(params) - 1
    wdt = jnp.dtype(weight_dtype) if weight_dtype is not None else w1.dtype

    Din_p = _round_up(Din, 8)     # sublane pad only (no 128x HBM inflation of x)
    H_p = _round_up(H, lane)      # lane-dense hidden: unmasked vst, full MXU lanes

    w1_p = jnp.zeros((Din_p, H_p), wdt).at[:Din, :H].set(w1.astype(wdt))
    p1 = (jnp.zeros((3, H_p), jnp.float32)
          .at[0, :H].set(b1).at[1, :H].set(g1).at[2, :H].set(be1))

    if layer_N > 0:
        wh_p = jnp.zeros((layer_N, H_p, H_p), wdt)
        ph_p = jnp.zeros((layer_N, 3, H_p), jnp.float32)
        for l, (w, b, g, be) in enumerate(params[1:]):
            wh_p = wh_p.at[l, :H, :H].set(w.astype(wdt))
            ph_p = (ph_p.at[l, 0, :H].set(b)
                        .at[l, 1, :H].set(g)
                        .at[l, 2, :H].set(be))
    else:
        wh_p = ph_p = None

    return dict(w1=w1_p, p1=p1, wh=wh_p, ph=ph_p,
                din=Din, din_pad=Din_p, h=H, h_pad=H_p, layer_N=layer_N)


def _vmem_limit_bytes(tm, din_p, h_p, layer_N, w_itemsize, x_itemsize, out_itemsize):
    """Explicit scoped-VMEM limit: resident weights (single-buffered) +
    double-buffered x/out tiles + headroom, clamped to the chip's capacity."""
    resident = (din_p * h_p * w_itemsize              # w1
                + 8 * h_p * 4                         # p1 (3 rows -> 8-sublane pad)
                + layer_N * h_p * h_p * w_itemsize    # stacked fc_h weights
                + layer_N * 8 * h_p * 4)              # stacked fc_h bias/gamma/beta
    pipelined = 2 * tm * din_p * x_itemsize + 2 * tm * h_p * out_itemsize
    need = resident + pipelined + (4 << 20)           # compiler scratch headroom
    try:
        cap = int(pltpu.get_tpu_info().vmem_capacity_bytes)
    except Exception:
        cap = 64 << 20                                # conservative (v7x per-TC)
    return int(min(max(need, 32 << 20), cap - (8 << 20)))


# ----------------------------------------------------------------------------
# Forward: one pallas_call over batch tiles.
# ----------------------------------------------------------------------------
def mlp_layer_forward(x, packed, *, use_relu=True, eps=1e-5, block_rows=256):
    B, Din = x.shape
    assert Din == packed["din"], (Din, packed["din"])
    Din_p, H, H_p = packed["din_pad"], packed["h"], packed["h_pad"]
    layer_N = packed["layer_N"]

    # Batch tiling: tm multiple of 8; default 256 keeps the 2x256x256 MXU full on
    # v6e/v7x. If the grid would collapse to one tile, halve tm so the "parallel"
    # axis has >= 2 tiles to shard across v7x's two TensorCores.
    B8 = _round_up(B, 8)
    tm = min(block_rows, B8)
    if B8 >= 16 and tm * 2 > B8:
        tm = _round_up(B8 // 2, 8)
    B_p = _round_up(B8, tm)

    # Skip the padded x copy entirely when shapes already line up.
    if (B_p, Din_p) != (B, Din):
        x_p = jnp.zeros((B_p, Din_p), x.dtype).at[:B, :Din].set(x)
    else:
        x_p = x

    kernel = functools.partial(_fused_mlp_kernel, layer_N=layer_N,
                               use_relu=use_relu, eps=eps, h_real=H)

    resident = pl.Buffered(1)   # constant index_map -> no double buffering needed
    in_specs = [
        pl.BlockSpec((tm, Din_p), lambda i: (i, 0)),                         # x tile
        pl.BlockSpec((Din_p, H_p), lambda i: (0, 0), pipeline_mode=resident),  # w1
        pl.BlockSpec((3, H_p), lambda i: (0, 0), pipeline_mode=resident),       # p1
    ]
    args = [x_p, packed["w1"], packed["p1"]]
    if layer_N > 0:
        in_specs += [
            pl.BlockSpec((layer_N, H_p, H_p), lambda i: (0, 0, 0),
                         pipeline_mode=resident),                            # wh
            pl.BlockSpec((layer_N, 3, H_p), lambda i: (0, 0, 0),
                         pipeline_mode=resident),                            # ph
        ]
        args += [packed["wh"], packed["ph"]]

    w_isz = packed["w1"].dtype.itemsize
    x_isz = jnp.dtype(x.dtype).itemsize
    o_isz = x_isz
    vmem_limit = _vmem_limit_bytes(tm, Din_p, H_p, layer_N, w_isz, x_isz, o_isz)

    flops = int(2 * B_p * Din_p * H_p + 2 * layer_N * B_p * H_p * H_p)
    transcendentals = 0 if use_relu else int((layer_N + 1) * B_p * H_p)
    bytes_accessed = int(
        x_p.size * x_isz
        + packed["w1"].size * w_isz + packed["p1"].size * 4
        + (packed["wh"].size * w_isz + packed["ph"].size * 4 if layer_N > 0 else 0)
        + B_p * H_p * o_isz)

    out_p = pl.pallas_call(
        kernel,
        out_shape=jax.ShapeDtypeStruct((B_p, H_p), x.dtype),
        grid=(B_p // tm,),
        in_specs=in_specs,
        out_specs=pl.BlockSpec((tm, H_p), lambda i: (i, 0)),
        compiler_params=pltpu.CompilerParams(
            dimension_semantics=("parallel",),
            vmem_limit_bytes=vmem_limit),
        cost_estimate=pl.CostEstimate(flops=flops,
                                      transcendentals=transcendentals,
                                      bytes_accessed=bytes_accessed),
    )(*args)

    return out_p[:B, :H]


# ----------------------------------------------------------------------------
# Initialization mirroring MLPLayer.__init__ (orthogonal/xavier, zero bias,
# LayerNorm weight=1 / bias=0). Weights stored as [in, out] so y = x @ W + b.
# ----------------------------------------------------------------------------
def init_mlp_params(key, input_dim, hidden_size, layer_N,
                    use_orthogonal=True, use_relu=True):
    gain = jnp.sqrt(2.0) if use_relu else 5.0 / 3.0  # calculate_gain('relu'/'tanh')
    if use_orthogonal:
        w_init = jax.nn.initializers.orthogonal(scale=gain)
    else:
        w_init = jax.nn.initializers.glorot_uniform()

    params = []
    keys = jax.random.split(key, layer_N + 1)
    dims = [(input_dim, hidden_size)] + [(hidden_size, hidden_size)] * layer_N
    for k, (din, dout) in zip(keys, dims):
        w = w_init(k, (din, dout), jnp.float32)
        b = jnp.zeros((dout,), jnp.float32)
        gamma = jnp.ones((dout,), jnp.float32)
        beta = jnp.zeros((dout,), jnp.float32)
        params.append((w, b, gamma, beta))
    return params


def _mlp_reference(x, params, *, use_relu=True, eps=1e-5):
    """Pure-JAX reference of the PyTorch forward."""
    for (w, b, g, be) in params:
        y = x @ w + b
        a = jnp.maximum(y, 0.0) if use_relu else jnp.tanh(y)
        mean = jnp.mean(a, axis=-1, keepdims=True)
        var = jnp.mean((a - mean) ** 2, axis=-1, keepdims=True)
        x = (a - mean) / jnp.sqrt(var + eps) * g + be
    return x


if __name__ == "__main__":
    key = jax.random.PRNGKey(0)
    k_params, k_x, k_params2, k_x2 = jax.random.split(key, 4)

    # --- Config 1: ReLU, 2 hidden clones, Din != hidden (exercises padding). ---
    batch, input_dim, hidden_size, layer_N = 64, 20, 32, 2
    params = init_mlp_params(k_params, input_dim, hidden_size, layer_N,
                             use_orthogonal=True, use_relu=True)
    packed = pack_mlp_params(params)
    x = jax.random.normal(k_x, (batch, input_dim), jnp.float32)

    out = mlp_layer_forward(x, packed, use_relu=True)   # tm auto-halved -> grid (2,)
    jax.block_until_ready(out)
    ref = _mlp_reference(x, params, use_relu=True)
    assert out.shape == (batch, hidden_size), out.shape
    assert bool(jnp.all(jnp.isfinite(out)))
    assert bool(jnp.allclose(out, ref, rtol=1e-4, atol=1e-4)), \
        float(jnp.max(jnp.abs(out - ref)))

    # --- Config 2: Tanh, layer_N = 0 (no dummy hidden-weight slab), no x pad copy. -
    batch2, input_dim2, hidden_size2, layer_N2 = 16, 8, 32, 0
    params2 = init_mlp_params(k_params2, input_dim2, hidden_size2, layer_N2,
                              use_orthogonal=False, use_relu=False)
    packed2 = pack_mlp_params(params2)
    x2 = jax.random.normal(k_x2, (batch2, input_dim2), jnp.float32)

    out2 = mlp_layer_forward(x2, packed2, use_relu=False)
    jax.block_until_ready(out2)
    ref2 = _mlp_reference(x2, params2, use_relu=False)
    assert out2.shape == (batch2, hidden_size2), out2.shape
    assert bool(jnp.allclose(out2, ref2, rtol=1e-4, atol=1e-4)), \
        float(jnp.max(jnp.abs(out2 - ref2)))

    print("KERNEL_OK")
</pallas_src>

<mosaic_0001>
module attributes {stable_mosaic.version = 11 : i64} {
  func.func @_fused_mlp_kernel(%arg0: i32, %arg1: memref<32x24xf32, #tpu.memory_space<vmem>>, %arg2: memref<24x128xf32, #tpu.memory_space<vmem>>, %arg3: memref<3x128xf32, #tpu.memory_space<vmem>>, %arg4: memref<2x128x128xf32, #tpu.memory_space<vmem>>, %arg5: memref<2x3x128xf32, #tpu.memory_space<vmem>>, %arg6: memref<32x128xf32, #tpu.memory_space<vmem>>) attributes {dimension_semantics = [#tpu.dimension_semantics<parallel>], iteration_bounds = array<i64: 2>, scalar_prefetch = 0 : i64, scratch_operands = 0 : i64, tpu.core_type = #tpu.core_type<tc>, window_params = [{transform_indices = @transform_0, window_bounds = array<i64: 32, 24>}, {pipeline_mode = #tpu.pipeline_mode<synchronous>, transform_indices = @transform_1, window_bounds = array<i64: 24, 128>}, {pipeline_mode = #tpu.pipeline_mode<synchronous>, transform_indices = @transform_2, window_bounds = array<i64: 3, 128>}, {pipeline_mode = #tpu.pipeline_mode<synchronous>, transform_indices = @transform_3, window_bounds = array<i64: 2, 128, 128>}, {pipeline_mode = #tpu.pipeline_mode<synchronous>, transform_indices = @transform_4, window_bounds = array<i64: 2, 3, 128>}, {transform_indices = @transform_5, window_bounds = array<i64: 32, 128>}]} {
    %c0 = arith.constant 0 : index
    %c0_0 = arith.constant 0 : index
    %0 = vector.load %arg1[%c0, %c0_0] : memref<32x24xf32, #tpu.memory_space<vmem>>, vector<32x24xf32>
    %c0_1 = arith.constant 0 : index
    %c0_2 = arith.constant 0 : index
    %1 = vector.load %arg2[%c0_1, %c0_2] : memref<24x128xf32, #tpu.memory_space<vmem>>, vector<24x128xf32>
    %c0_3 = arith.constant 0 : index
    %c0_4 = arith.constant 0 : index
    %2 = vector.load %arg3[%c0_3, %c0_4] : memref<3x128xf32, #tpu.memory_space<vmem>>, vector<3x128xf32>
    %3 = vector.extract_strided_slice %2 {offsets = [0, 0], sizes = [1, 128], strides = [1, 1]} : vector<3x128xf32> to vector<1x128xf32>
    %4 = vector.extract_strided_slice %2 {offsets = [1, 0], sizes = [1, 128], strides = [1, 1]} : vector<3x128xf32> to vector<1x128xf32>
    %5 = vector.extract_strided_slice %2 {offsets = [2, 0], sizes = [1, 128], strides = [1, 1]} : vector<3x128xf32> to vector<1x128xf32>
    %cst = arith.constant dense<0.000000e+00> : vector<32x128xf32>
    %6 = tpu.matmul %0, %1, %cst {dimension_numbers = #tpu.dot_dimension_numbers<[1], [0], [0], [1], [0, 0, 1, 1], [], []>} : vector<32x24xf32>, vector<24x128xf32>, vector<32x128xf32> -> vector<32x128xf32>
    %7 = vector.broadcast %3 : vector<1x128xf32> to vector<32x128xf32>
    %8 = arith.addf %6, %7 : vector<32x128xf32>
    %cst_5 = arith.constant 0.000000e+00 : f32
    %9 = vector.broadcast %cst_5 : f32 to vector<32x128xf32>
    %10 = arith.maximumf %8, %9 : vector<32x128xf32>
    %cst_6 = arith.constant dense<0.000000e+00> : vector<32xf32>
    %11 = vector.multi_reduction <add>, %10, %cst_6 [1] : vector<32x128xf32> to vector<32xf32>
    %12 = vector.shape_cast %11 : vector<32xf32> to vector<32x1xf32>
    %cst_7 = arith.constant 3.125000e-02 : f32
    %13 = vector.broadcast %cst_7 : f32 to vector<32x1xf32>
    %14 = arith.mulf %12, %13 : vector<32x1xf32>
    %15 = arith.mulf %10, %10 : vector<32x128xf32>
    %cst_8 = arith.constant dense<0.000000e+00> : vector<32xf32>
    %16 = vector.multi_reduction <add>, %15, %cst_8 [1] : vector<32x128xf32> to vector<32xf32>
    %17 = vector.shape_cast %16 : vector<32xf32> to vector<32x1xf32>
    %cst_9 = arith.constant 3.125000e-02 : f32
    %18 = vector.broadcast %cst_9 : f32 to vector<32x1xf32>
    %19 = arith.mulf %17, %18 : vector<32x1xf32>
    %20 = arith.mulf %14, %14 : vector<32x1xf32>
    %21 = arith.subf %19, %20 : vector<32x1xf32>
    %cst_10 = arith.constant 0.000000e+00 : f32
    %22 = vector.broadcast %cst_10 : f32 to vector<32x1xf32>
    %23 = arith.maximumf %21, %22 : vector<32x1xf32>
    %24 = vector.broadcast %14 : vector<32x1xf32> to vector<32x128xf32>
    %25 = arith.subf %10, %24 : vector<32x128xf32>
    %cst_11 = arith.constant 9.99999974E-6 : f32
    %26 = vector.broadcast %cst_11 : f32 to vector<32x1xf32>
    %27 = arith.addf %23, %26 : vector<32x1xf32>
    %28 = math.rsqrt %27 : vector<32x1xf32>
    %29 = vector.broadcast %28 : vector<32x1xf32> to vector<32x128xf32>
    %30 = arith.mulf %25, %29 : vector<32x128xf32>
    %31 = vector.broadcast %4 : vector<1x128xf32> to vector<32x128xf32>
    %32 = arith.mulf %30, %31 : vector<32x128xf32>
    %33 = vector.broadcast %5 : vector<1x128xf32> to vector<32x128xf32>
    %34 = arith.addf %32, %33 : vector<32x128xf32>
    %c0_12 = arith.constant 0 : index
    %c0_13 = arith.constant 0 : index
    %c0_14 = arith.constant 0 : index
    %35 = vector.load %arg4[%c0_12, %c0_13, %c0_14] : memref<2x128x128xf32, #tpu.memory_space<vmem>>, vector<1x128x128xf32>
    %36 = vector.shape_cast %35 : vector<1x128x128xf32> to vector<128x128xf32>
    %c0_15 = arith.constant 0 : index
    %c0_16 = arith.constant 0 : index
    %c0_17 = arith.constant 0 : index
    %37 = vector.load %arg5[%c0_15, %c0_16, %c0_17] : memref<2x3x128xf32, #tpu.memory_space<vmem>>, vector<1x3x128xf32>
    %38 = vector.shape_cast %37 : vector<1x3x128xf32> to vector<3x128xf32>
    %39 = vector.extract_strided_slice %38 {offsets = [0, 0], sizes = [1, 128], strides = [1, 1]} : vector<3x128xf32> to vector<1x128xf32>
    %40 = vector.extract_strided_slice %38 {offsets = [1, 0], sizes = [1, 128], strides = [1, 1]} : vector<3x128xf32> to vector<1x128xf32>
    %41 = vector.extract_strided_slice %38 {offsets = [2, 0], sizes = [1, 128], strides = [1, 1]} : vector<3x128xf32> to vector<1x128xf32>
    %cst_18 = arith.constant dense<0.000000e+00> : vector<32x128xf32>
    %42 = tpu.matmul %34, %36, %cst_18 {dimension_numbers = #tpu.dot_dimension_numbers<[1], [0], [0], [1], [0, 0, 1, 1], [], []>} : vector<32x128xf32>, vector<128x128xf32>, vector<32x128xf32> -> vector<32x128xf32>
    %43 = vector.broadcast %39 : vector<1x128xf32> to vector<32x128xf32>
    %44 = arith.addf %42, %43 : vector<32x128xf32>
    %cst_19 = arith.constant 0.000000e+00 : f32
    %45 = vector.broadcast %cst_19 : f32 to vector<32x128xf32>
    %46 = arith.maximumf %44, %45 : vector<32x128xf32>
    %cst_20 = arith.constant dense<0.000000e+00> : vector<32xf32>
    %47 = vector.multi_reduction <add>, %46, %cst_20 [1] : vector<32x128xf32> to vector<32xf32>
    %48 = vector.shape_cast %47 : vector<32xf32> to vector<32x1xf32>
    %cst_21 = arith.constant 3.125000e-02 : f32
    %49 = vector.broadcast %cst_21 : f32 to vector<32x1xf32>
    %50 = arith.mulf %48, %49 : vector<32x1xf32>
    %51 = arith.mulf %46, %46 : vector<32x128xf32>
    %cst_22 = arith.constant dense<0.000000e+00> : vector<32xf32>
    %52 = vector.multi_reduction <add>, %51, %cst_22 [1] : vector<32x128xf32> to vector<32xf32>
    %53 = vector.shape_cast %52 : vector<32xf32> to vector<32x1xf32>
    %cst_23 = arith.constant 3.125000e-02 : f32
    %54 = vector.broadcast %cst_23 : f32 to vector<32x1xf32>
    %55 = arith.mulf %53, %54 : vector<32x1xf32>
    %56 = arith.mulf %50, %50 : vector<32x1xf32>
    %57 = arith.subf %55, %56 : vector<32x1xf32>
    %cst_24 = arith.constant 0.000000e+00 : f32
    %58 = vector.broadcast %cst_24 : f32 to vector<32x1xf32>
    %59 = arith.maximumf %57, %58 : vector<32x1xf32>
    %60 = vector.broadcast %50 : vector<32x1xf32> to vector<32x128xf32>
    %61 = arith.subf %46, %60 : vector<32x128xf32>
    %cst_25 = arith.constant 9.99999974E-6 : f32
    %62 = vector.broadcast %cst_25 : f32 to vector<32x1xf32>
    %63 = arith.addf %59, %62 : vector<32x1xf32>
    %64 = math.rsqrt %63 : vector<32x1xf32>
    %65 = vector.broadcast %64 : vector<32x1xf32> to vector<32x128xf32>
    %66 = arith.mulf %61, %65 : vector<32x128xf32>
    %67 = vector.broadcast %40 : vector<1x128xf32> to vector<32x128xf32>
    %68 = arith.mulf %66, %67 : vector<32x128xf32>
    %69 = vector.broadcast %41 : vector<1x128xf32> to vector<32x128xf32>
    %70 = arith.addf %68, %69 : vector<32x128xf32>
    %c1 = arith.constant 1 : index
    %c0_26 = arith.constant 0 : index
    %c0_27 = arith.constant 0 : index
    %71 = vector.load %arg4[%c1, %c0_26, %c0_27] : memref<2x128x128xf32, #tpu.memory_space<vmem>>, vector<1x128x128xf32>
    %72 = vector.shape_cast %71 : vector<1x128x128xf32> to vector<128x128xf32>
    %c1_28 = arith.constant 1 : index
    %c0_29 = arith.constant 0 : index
    %c0_30 = arith.constant 0 : index
    %73 = vector.load %arg5[%c1_28, %c0_29, %c0_30] : memref<2x3x128xf32, #tpu.memory_space<vmem>>, vector<1x3x128xf32>
    %74 = vector.shape_cast %73 : vector<1x3x128xf32> to vector<3x128xf32>
    %75 = vector.extract_strided_slice %74 {offsets = [0, 0], sizes = [1, 128], strides = [1, 1]} : vector<3x128xf32> to vector<1x128xf32>
    %76 = vector.extract_strided_slice %74 {offsets = [1, 0], sizes = [1, 128], strides = [1, 1]} : vector<3x128xf32> to vector<1x128xf32>
    %77 = vector.extract_strided_slice %74 {offsets = [2, 0], sizes = [1, 128], strides = [1, 1]} : vector<3x128xf32> to vector<1x128xf32>
    %cst_31 = arith.constant dense<0.000000e+00> : vector<32x128xf32>
    %78 = tpu.matmul %70, %72, %cst_31 {dimension_numbers = #tpu.dot_dimension_numbers<[1], [0], [0], [1], [0, 0, 1, 1], [], []>} : vector<32x128xf32>, vector<128x128xf32>, vector<32x128xf32> -> vector<32x128xf32>
    %79 = vector.broadcast %75 : vector<1x128xf32> to vector<32x128xf32>
    %80 = arith.addf %78, %79 : vector<32x128xf32>
    %cst_32 = arith.constant 0.000000e+00 : f32
    %81 = vector.broadcast %cst_32 : f32 to vector<32x128xf32>
    %82 = arith.maximumf %80, %81 : vector<32x128xf32>
    %cst_33 = arith.constant dense<0.000000e+00> : vector<32xf32>
    %83 = vector.multi_reduction <add>, %82, %cst_33 [1] : vector<32x128xf32> to vector<32xf32>
    %84 = vector.shape_cast %83 : vector<32xf32> to vector<32x1xf32>
    %cst_34 = arith.constant 3.125000e-02 : f32
    %85 = vector.broadcast %cst_34 : f32 to vector<32x1xf32>
    %86 = arith.mulf %84, %85 : vector<32x1xf32>
    %87 = arith.mulf %82, %82 : vector<32x128xf32>
    %cst_35 = arith.constant dense<0.000000e+00> : vector<32xf32>
    %88 = vector.multi_reduction <add>, %87, %cst_35 [1] : vector<32x128xf32> to vector<32xf32>
    %89 = vector.shape_cast %88 : vector<32xf32> to vector<32x1xf32>
    %cst_36 = arith.constant 3.125000e-02 : f32
    %90 = vector.broadcast %cst_36 : f32 to vector<32x1xf32>
    %91 = arith.mulf %89, %90 : vector<32x1xf32>
    %92 = arith.mulf %86, %86 : vector<32x1xf32>
    %93 = arith.subf %91, %92 : vector<32x1xf32>
    %cst_37 = arith.constant 0.000000e+00 : f32
    %94 = vector.broadcast %cst_37 : f32 to vector<32x1xf32>
    %95 = arith.maximumf %93, %94 : vector<32x1xf32>
    %96 = vector.broadcast %86 : vector<32x1xf32> to vector<32x128xf32>
    %97 = arith.subf %82, %96 : vector<32x128xf32>
    %cst_38 = arith.constant 9.99999974E-6 : f32
    %98 = vector.broadcast %cst_38 : f32 to vector<32x1xf32>
    %99 = arith.addf %95, %98 : vector<32x1xf32>
    %100 = math.rsqrt %99 : vector<32x1xf32>
    %101 = vector.broadcast %100 : vector<32x1xf32> to vector<32x128xf32>
    %102 = arith.mulf %97, %101 : vector<32x128xf32>
    %103 = vector.broadcast %76 : vector<1x128xf32> to vector<32x128xf32>
    %104 = arith.mulf %102, %103 : vector<32x128xf32>
    %105 = vector.broadcast %77 : vector<1x128xf32> to vector<32x128xf32>
    %106 = arith.addf %104, %105 : vector<32x128xf32>
    %c0_39 = arith.constant 0 : index
    %c0_40 = arith.constant 0 : index
    %107 = vector.load %arg6[%c0_39, %c0_40] : memref<32x128xf32, #tpu.memory_space<vmem>>, vector<32x128xf32>
    tpu.vector_store %arg6[%c0_39, %c0_40], %106 {strides = array<i32>} : memref<32x128xf32, #tpu.memory_space<vmem>>, vector<32x128xf32>,
    return
  }
  func.func @transform_0(%arg0: i32) -> (i32, i32) {
    %c0_i32 = arith.constant 0 : i32
    %c0_i32_0 = arith.constant 0 : i32
    return %arg0, %c0_i32 : i32, i32
  }
  func.func @transform_1(%arg0: i32) -> (i32, i32) {
    %c0_i32 = arith.constant 0 : i32
    %c0_i32_0 = arith.constant 0 : i32
    %c0_i32_1 = arith.constant 0 : i32
    return %c0_i32, %c0_i32_0 : i32, i32
  }
  func.func @transform_2(%arg0: i32) -> (i32, i32) {
    %c0_i32 = arith.constant 0 : i32
    %c0_i32_0 = arith.constant 0 : i32
    %c0_i32_1 = arith.constant 0 : i32
    return %c0_i32, %c0_i32_0 : i32, i32
  }
  func.func @transform_3(%arg0: i32) -> (i32, i32, i32) {
    %c0_i32 = arith.constant 0 : i32
    %c0_i32_0 = arith.constant 0 : i32
    %c0_i32_1 = arith.constant 0 : i32
    %c0_i32_2 = arith.constant 0 : i32
    return %c0_i32, %c0_i32_0, %c0_i32_1 : i32, i32, i32
  }
  func.func @transform_4(%arg0: i32) -> (i32, i32, i32) {
    %c0_i32 = arith.constant 0 : i32
    %c0_i32_0 = arith.constant 0 : i32
    %c0_i32_1 = arith.constant 0 : i32
    %c0_i32_2 = arith.constant 0 : i32
    return %c0_i32, %c0_i32_0, %c0_i32_1 : i32, i32, i32
  }
  func.func @transform_5(%arg0: i32) -> (i32, i32) {
    %c0_i32 = arith.constant 0 : i32
    %c0_i32_0 = arith.constant 0 : i32
    return %arg0, %c0_i32 : i32, i32
  }
}

</mosaic_0001>

<llo_original>
// kernel: tpu_custom_call.1
$region0: #{tpu_custom_call.1}
  #allocation0 [shape = 'u32[]', space=smem, size = 0x4, offset = 0x4, fixed_abs, tag = 'smem constant byte address 0x4 - core index']
  #allocation1 [shape = 'u32[144,128]{1,0:T(1,128)}', space=vmem, size = 0x12000, scoped, tag = 'internal scratch']
  %s0 = inlined_call_operand.vmem [shape: f32[64,24], index: 0, kind: input, shape index: {}]
  %s1 = inlined_call_operand.vmem [shape: f32[24,128], index: 1, kind: input, shape index: {}]
  %s2 = inlined_call_operand.vmem [shape: f32[3,128], index: 2, kind: input, shape index: {}]
  %s3 = inlined_call_operand.hbm [shape: f32[2,128,128], index: 3, kind: input, shape index: {}]
  %s4 = inlined_call_operand.vmem [shape: f32[2,3,128], index: 4, kind: input, shape index: {}]
  %s5 = inlined_call_operand.hbm [shape: f32[64,128], index: 5, kind: output, shape index: {}]
  %s6 = sld [smem:[#allocation0]]
  $region57: #{tpu_custom_call.1} parent=0
    _
  %s8 = ssub.s32 1, %s6
  %s9 = scalar_select 0, %s8, %s6
  $region1: #{tpu_custom_call.1} parent=0
    #allocation2 [shape = 'u8[131072]{0}', space=vmem, size = 0x20000, scoped, tag = 'input window, operand 3, single buffered']
    #allocation3 [shape = 's32[2]{0}', space=sflag, size = 0x8, scoped, tag = 'scoped memory for tpu_custom_call.1']
    #allocation4 [shape = 's32[2]{0}', space=sflag, size = 0x8, scoped, tag = 'scoped memory for tpu_custom_call.1']
    #allocation5 [shape = 'u8[32768]{0}', space=vmem, size = 0x8000, scoped, tag = 'output window, operand 0']
    %10 = vsyncpa [#allocation3], 0
    %11 = vsyncpa [#allocation4], 0
    %s12 = scalar_lea.sflag [#allocation4], 1
    %13 = vsyncpa %s12, 0
    loop: start=0, step=1, limit=4
    $region2: #{tpu_custom_call.1} parent=1 // loop_pre_header
      _
    $region3: #{tpu_custom_call.1} parent=1 // loop_header
      %s15 = sphi 0, %s19
      %p16 = scmp.ge.s32.totalorder %s15, 4
      %s25 = sphi 0, %s27
      %s28 = sphi 0, %s25
      %s29 = sphi 0, %s28
      %s45 = sphi 0, %s29
      %s49 = sphi 0, %s49
      %s51 = sphi 0, %s49
      %s52 = sphi 0, %s51
      %s66 = sphi 0, %s52
      %s70 = sphi 0, %s70
      %s72 = sphi 0, %s70
      %s73 = sphi 0, %s72
      %s87 = sphi 0, %s73
      %s91 = sphi 0, %s91
      %s93 = sphi 0, %s91
      %s94 = sphi 0, %s93
      %s108 = sphi 0, %s94
      %s112 = sphi 0, %s112
      %s114 = sphi 0, %s112
      %s115 = sphi 0, %s114
      %s129 = sphi 0, %s115
      %s135 = sphi 0, %s137
      %s138 = sphi 0, %s135
      %s139 = sphi 0, %s138
      %s155 = sphi 0, %s139
    $region4: #{tpu_custom_call.1} parent=1 // loop_header_branch
      %18 = sbr.rel (%p16) target = $region8
    $region5: #{tpu_custom_call.1} parent=1 // loop_body
      %s20 = ssub.s32 %s15, 1
      %s21 = ssub.s32 %s15, 2
      %s22 = sadd.s32 %s15, 1
      %s23 = ssub.s32 %s15, %s22
      %p24 = scmp.eq.s32.totalorder %s23, 0
      %s26 = sadd.s32 %s25, 1
      %s27 = scalar_select %p24, %s25, %s26
      %p30 = pneg %p24
      %p31 = scmp.eq.s32.totalorder %s15, 1
      %p32 = por %p30, %p31
      %p33 = scmp.ne.s32.totalorder %s25, %s28
      %p34 = scmp.eq.s32.totalorder %s15, 0
      %p35 = por %p33, %p34
      %p36 = scmp.ne.s32.totalorder %s25, %s28
      %p37 = scmp.eq.s32.totalorder %s20, 1
      %p38 = por %p36, %p37
      %p39 = scmp.ne.s32.totalorder %s28, %s29
      %p40 = scmp.eq.s32.totalorder %s20, 0
      %p41 = por %p39, %p40
      %p42 = scmp.ne.s32.totalorder %s28, %s29
      %p43 = scmp.eq.s32.totalorder %s21, 1
      %p44 = por %p42, %p43
      %p46 = scmp.ne.s32.totalorder %s29, %s45
      %p47 = scmp.eq.s32.totalorder %s21, 0
      %p48 = por %p46, %p47
      %s50 = sadd.s32 %s49, 1
      %p53 = scmp.eq.s32.totalorder %s15, 1
      %p54 = scmp.ne.s32.totalorder %s49, %s51
      %p55 = scmp.eq.s32.totalorder %s15, 0
      %p56 = por %p54, %p55
      %p57 = scmp.ne.s32.totalorder %s49, %s51
      %p58 = scmp.eq.s32.totalorder %s20, 1
      %p59 = por %p57, %p58
      %p60 = scmp.ne.s32.totalorder %s51, %s52
      %p61 = scmp.eq.s32.totalorder %s20, 0
      %p62 = por %p60, %p61
      %p63 = scmp.ne.s32.totalorder %s51, %s52
      %p64 = scmp.eq.s32.totalorder %s21, 1
      %p65 = por %p63, %p64
      %p67 = scmp.ne.s32.totalorder %s52, %s66
      %p68 = scmp.eq.s32.totalorder %s21, 0
      %p69 = por %p67, %p68
      %s71 = sadd.s32 %s70, 1
      %p74 = scmp.eq.s32.totalorder %s15, 1
      %p75 = scmp.ne.s32.totalorder %s70, %s72
      %p76 = scmp.eq.s32.totalorder %s15, 0
      %p77 = por %p75, %p76
      %p78 = scmp.ne.s32.totalorder %s70, %s72
      %p79 = scmp.eq.s32.totalorder %s20, 1
      %p80 = por %p78, %p79
      %p81 = scmp.ne.s32.totalorder %s72, %s73
      %p82 = scmp.eq.s32.totalorder %s20, 0
      %p83 = por %p81, %p82
      %p84 = scmp.ne.s32.totalorder %s72, %s73
      %p85 = scmp.eq.s32.totalorder %s21, 1
      %p86 = por %p84, %p85
      %p88 = scmp.ne.s32.totalorder %s73, %s87
      %p89 = scmp.eq.s32.totalorder %s21, 0
      %p90 = por %p88, %p89
      %s92 = sadd.s32 %s91, 1
      %p95 = scmp.eq.s32.totalorder %s15, 1
      %p96 = scmp.ne.s32.totalorder %s91, %s93
      %p97 = scmp.eq.s32.totalorder %s15, 0
      %p98 = por %p96, %p97
      %p99 = scmp.ne.s32.totalorder %s91, %s93
      %p100 = scmp.eq.s32.totalorder %s20, 1
      %p101 = por %p99, %p100
      %p102 = scmp.ne.s32.totalorder %s93, %s94
      %p103 = scmp.eq.s32.totalorder %s20, 0
      %p104 = por %p102, %p103
      %p105 = scmp.ne.s32.totalorder %s93, %s94
      %p106 = scmp.eq.s32.totalorder %s21, 1
      %p107 = por %p105, %p106
      %p109 = scmp.ne.s32.totalorder %s94, %s108
      %p110 = scmp.eq.s32.totalorder %s21, 0
      %p111 = por %p109, %p110
      %s113 = sadd.s32 %s112, 1
      %p116 = scmp.eq.s32.totalorder %s15, 1
      %p117 = scmp.ne.s32.totalorder %s112, %s114
      %p118 = scmp.eq.s32.totalorder %s15, 0
      %p119 = por %p117, %p118
      %p120 = scmp.ne.s32.totalorder %s112, %s114
      %p121 = scmp.eq.s32.totalorder %s20, 1
      %p122 = por %p120, %p121
      %p123 = scmp.ne.s32.totalorder %s114, %s115
      %p124 = scmp.eq.s32.totalorder %s20, 0
      %p125 = por %p123, %p124
      %p126 = scmp.ne.s32.totalorder %s114, %s115
      %p127 = scmp.eq.s32.totalorder %s21, 1
      %p128 = por %p126, %p127
      %p130 = scmp.ne.s32.totalorder %s115, %s129
      %p131 = scmp.eq.s32.totalorder %s21, 0
      %p132 = por %p130, %p131
      %s133 = ssub.s32 %s15, %s22
      %p134 = scmp.eq.s32.totalorder %s133, 0
      %s136 = sadd.s32 %s135, 1
      %s137 = scalar_select %p134, %s135, %s136
      %p140 = pneg %p134
      %p141 = scmp.eq.s32.totalorder %s15, 1
      %p142 = por %p140, %p141
      %p143 = scmp.ne.s32.totalorder %s135, %s138
      %p144 = scmp.eq.s32.totalorder %s15, 0
      %p145 = por %p143, %p144
      %p146 = scmp.ne.s32.totalorder %s135, %s138
      %p147 = scmp.eq.s32.totalorder %s20, 1
      %p148 = por %p146, %p147
      %p149 = scmp.ne.s32.totalorder %s138, %s139
      %p150 = scmp.eq.s32.totalorder %s20, 0
      %p151 = por %p149, %p150
      %p152 = scmp.ne.s32.totalorder %s138, %s139
      %p153 = scmp.eq.s32.totalorder %s21, 1
      %p154 = por %p152, %p153
      %p156 = scmp.ne.s32.totalorder %s139, %s155
      %p157 = scmp.eq.s32.totalorder %s21, 0
      %p158 = por %p156, %p157
      %p159 = scmp.le.s32.totalorder 1, %s15
      %p160 = scmp.lt.s32.totalorder %s15, 3
      %p161 = pnand %p159, %p160
      %p162 = pneg %p161
      // Predicated region
      $region9: #{tpu_custom_call.1} parent=5 // pred_check
        _
      $region10: #{tpu_custom_call.1} parent=5 // pred_check_branch
        %164 = sbr.rel (%p161) target = $region12
      $region11: #{tpu_custom_call.1} parent=5 // pred_region
        %s165 = ssub.s32 %s15, 1
        // Predicated region
        $region13: #{tpu_custom_call.1} parent=11 // pred_check
          %p166 = pneg %p62
        $region14: #{tpu_custom_call.1} parent=11 // pred_check_branch
          %168 = sbr.rel (%p166) target = $region16
        $region15: #{tpu_custom_call.1} parent=11 // pred_region
          _
        $region16: #{tpu_custom_call.1} parent=11 // pred_fallthru
          _
        // Predicated region
        $region17: #{tpu_custom_call.1} parent=11 // pred_check
          %p169 = pneg %p83
        $region18: #{tpu_custom_call.1} parent=11 // pred_check_branch
          %171 = sbr.rel (%p169) target = $region20
        $region19: #{tpu_custom_call.1} parent=11 // pred_region
          _
        $region20: #{tpu_custom_call.1} parent=11 // pred_fallthru
          _
        // Predicated region
        $region21: #{tpu_custom_call.1} parent=11 // pred_check
          %p172 = pneg %p104
        $region22: #{tpu_custom_call.1} parent=11 // pred_check_branch
          %174 = sbr.rel (%p172) target = $region24
        $region23: #{tpu_custom_call.1} parent=11 // pred_region
          %s176 = ssub.s32 4096, 4096
          %177 = vsyncadd [#allocation3], %s176
          %s178 = sshll.u32 [#allocation2], 4
          %s179 = int_to_ptr.vmem [resolvable:$true] %s178
          %184 = dma.hbm_to_vmem [thread:$0]  %s3, 4096, %s179, [#allocation3], 128, 128, 8
        $region24: #{tpu_custom_call.1} parent=11 // pred_fallthru
          _
        // Predicated region
        $region25: #{tpu_custom_call.1} parent=11 // pred_check
          %p185 = pneg %p125
        $region26: #{tpu_custom_call.1} parent=11 // pred_check_branch
          %187 = sbr.rel (%p185) target = $region28
        $region27: #{tpu_custom_call.1} parent=11 // pred_region
          _
        $region28: #{tpu_custom_call.1} parent=11 // pred_fallthru
          _
      $region12: #{tpu_custom_call.1} parent=5 // pred_fallthru
        _
      %p188 = scmp.lt.s32.totalorder %s15, 2
      // Predicated region
      $region29: #{tpu_custom_call.1} parent=5 // pred_check
        %p189 = pneg %p188
      $region30: #{tpu_custom_call.1} parent=5 // pred_check_branch
        %191 = sbr.rel (%p189) target = $region32
      $region31: #{tpu_custom_call.1} parent=5 // pred_region
        // Predicated region
        $region33: #{tpu_custom_call.1} parent=31 // pred_check
          %p192 = pneg %p35
        $region34: #{tpu_custom_call.1} parent=31 // pred_check_branch
          %194 = sbr.rel (%p192) target = $region36
        $region35: #{tpu_custom_call.1} parent=31 // pred_region
          %s195 = smul.u32 4, %s15
          %p196 = scmp.lt.s32.totalorder %s195, 7
          %s197 = scalar_select %p196, %s195, 7
          %s198 = smul.addr %s197, 8
          %s199 = scalar_lea.vmem %s0, %s198
          %s200 = smul.u32 4, %s15
        $region36: #{tpu_custom_call.1} parent=31 // pred_fallthru
          _
      $region32: #{tpu_custom_call.1} parent=5 // pred_fallthru
        _
      %p201 = scmp.le.s32.totalorder 1, %s15
      %p202 = scmp.lt.s32.totalorder %s15, 3
      %p203 = pnand %p201, %p202
      %p204 = pneg %p203
      // Predicated region
      $region37: #{tpu_custom_call.1} parent=5 // pred_check
        _
      $region38: #{tpu_custom_call.1} parent=5 // pred_check_branch
        %206 = sbr.rel (%p203) target = $region40
      $region39: #{tpu_custom_call.1} parent=5 // pred_region
        %s207 = ssub.s32 %s15, 1
        // Predicated region
        $region41: #{tpu_custom_call.1} parent=39 // pred_check
          %p208 = pneg %p104
        $region42: #{tpu_custom_call.1} parent=39 // pred_check_branch
          %210 = sbr.rel (%p208) target = $region44
        $region43: #{tpu_custom_call.1} parent=39 // pred_region
          %211 = dma.done [#allocation3], 4096
        $region44: #{tpu_custom_call.1} parent=39 // pred_fallthru
          _
        %s212 = smul.u32 4, %s20
        %p213 = scmp.lt.s32.totalorder %s212, 7
        %s214 = scalar_select %p213, %s212, 7
        %s215 = smul.addr %s214, 8
        %s216 = scalar_lea.vmem %s0, %s215
        %p217 = pneg %p41
        %p218 = pneg %p38
        %p219 = pneg %p62
        %p220 = pneg %p59
        %p221 = pneg %p83
        %p222 = pneg %p80
        %p223 = pneg %p104
        %p224 = pneg %p101
        %p225 = pneg %p125
        %p226 = pneg %p122
        %p227 = pneg %p151
        %p228 = pneg %p148
        %s229 = sand.u32 %s138, 1
        %s230 = scalar_lea.sflag [#allocation4], %s229
        %s231 = sand.u32 %s138, 1
        %s232 = smul.addr %s231, 32
        %s233 = scalar_lea.vmem [#allocation5], %s232
        %s234 = smul.u32 4, %s20
        %p235 = scmp.lt.s32.totalorder %s234, 7
        %s236 = scalar_select %p235, %s234, 7
        %s237 = smul.addr %s236, 8
        %s238 = scalar_lea.vmem %s0, %s237
        %s239 = smul.u32 4, %s20
        %s240 = smul.u32 4, %s20
        %v241 = vld [vmem:[%s238] sm:$0xff]
        %v242 = vld [vmem:[%s238 + $0x8] sm:$0xff]
        %v243 = vld [vmem:[%s238 + $0x10] sm:$0xff]
        %v244 = vld [vmem:[%s238 + $0x18] sm:$0xff]
        %v245 = vld [vmem:[%s1] sm:$0xff]
        %v246 = vld [vmem:[%s1 + $0x8] sm:$0xff]
        %v247 = vld [vmem:[%s1 + $0x10] sm:$0xff]
        %v248 = vld [vmem:[%s2] sm:$0x7]
        %v249 = vlaneseq
        %v250 = vshrl.u32 %v249, 7
        %v251 = vsub.s32 0, %v250
        %v252 = vrot.slane %v248, %v251
        %vm253 = vcmask 195584
        %v255 = vsel %vm253, %v241, 0
        %v258 = vsel %vm253, %v242, 0
        %v261 = vsel %vm253, %v243, 0
        %v264 = vsel %vm253, %v244, 0
        %266 = vmatprep.subr.mxu0 0.0
        %267 = vmatpush1.msra.mxu0 %v245
        %268 = vmatprep.subr.mxu0 0.0
        %269 = vmatpush1.msra.mxu0 %v246
        %270 = vmatprep.subr.mxu0 0.0
        %271 = vmatpush1.msra.mxu0 %v247
        %272 = vmatprep.subr.mxu0 0.0
        %273 = vmatpush1.msra.mxu0 0.0
        %274 = vmatprep.subr.mxu0 0.0
        %275 = vmatpush1.msra.mxu0 0.0
        %276 = vmatprep.subr.mxu0 0.0
        %277 = vmatpush1.msra.mxu0 0.0
        %278 = vmatprep.subr.mxu0 0.0
        %279 = vmatpush1.msra.mxu0 0.0
        %280 = vmatprep.subr.mxu0 0.0
        %281 = vmatpush1.msra.mxu0 0.0
        %282 = vmatprep.subr.mxu0 0.0
        %283 = vmatpush1.msra.mxu0 0.0
        %284 = vmatprep.subr.mxu0 0.0
        %285 = vmatpush1.msra.mxu0 0.0
        %286 = vmatprep.subr.mxu0 0.0
        %287 = vmatpush1.msra.mxu0 0.0
        %288 = vmatprep.subr.mxu0 0.0
        %289 = vmatpush1.msra.mxu0 0.0
        %290 = vmatprep.subr.mxu0 0.0
        %291 = vmatpush1.msra.mxu0 0.0
        %292 = vmatprep.subr.mxu0 0.0
        %293 = vmatpush1.msra.mxu0 0.0
        %294 = vmatprep.subr.mxu0 0.0
        %295 = vmatpush1.msra.mxu0 0.0
        %296 = vmatprep.subr.mxu0 0.0
        %297 = vmatpush1.msra.mxu0 0.0
        %298 = vmatprep.subr.mxu0 0.0
        %299 = vmatpush1.msra.mxu0 0.0
        %300 = vmatprep.subr.mxu0 0.0
        %301 = vmatpush1.msra.mxu0 0.0
        %302 = vmatprep.subr.mxu0 0.0
        %303 = vmatpush1.msra.mxu0 0.0
        %304 = vmatprep.subr.mxu0 0.0
        %305 = vmatpush1.msra.mxu0 0.0
        %306 = vmatprep.subr.mxu0 0.0
        %307 = vmatpush1.msra.mxu0 0.0
        %308 = vmatprep.subr.mxu0 0.0
        %309 = vmatpush1.msra.mxu0 0.0
        %310 = vmatprep.subr.mxu0 0.0
        %311 = vmatpush1.msra.mxu0 0.0
        %312 = vmatprep.subr.mxu0 0.0
        %313 = vmatpush1.msra.mxu0 0.0
        %314 = vmatprep.subr.mxu0 0.0
        %315 = vmatpush1.msra.mxu0 0.0
        %316 = vmatprep.subr.mxu0 0.0
        %317 = vmatpush1.msra.mxu0 0.0
        %318 = vmatprep.subr.mxu0 0.0
        %319 = vmatpush1.msra.mxu0 0.0
        %320 = vmatprep.subr.mxu0 0.0
        %321 = vmatpush1.msra.mxu0 0.0
        %322 = vmatprep.subr.mxu0 0.0
        %323 = vmatpush1.msra.mxu0 0.0
        %324 = vmatprep.subr.mxu0 0.0
        %325 = vmatpush1.msra.mxu0 0.0
        %326 = vmatprep.subr.mxu0 0.0
        %327 = vmatpush1.msra.mxu0 0.0
        %328 = vmatprep.subr.mxu0 0.0
        %329 = vmatpush1.msra.mxu0 0.0
        %330 = vmatprep.mubr.f32.mxu0 0.0
        %331 = vmatmul.mubr.f32.gmra.mrb[0].mxu0 %v255
        %v332 = vpop.f32.mrb[0].mxu0
        %v333 = vadd.f32 %v252, %v332
        %v334 = vpop.f32.mrb[0].mxu0
        %335 = vmatprep.mubr.f32.mxu0 0.0
        %336 = vmatmul.mubr.f32.gmra.mrb[0].mxu0 %v258
        %v337 = vpop.f32.mrb[0].mxu0
        %v338 = vadd.f32 %v252, %v337
        %v339 = vpop.f32.mrb[0].mxu0
        %340 = vmatprep.mubr.f32.mxu0 0.0
        %341 = vmatmul.mubr.f32.gmra.mrb[0].mxu0 %v261
        %v342 = vpop.f32.mrb[0].mxu0
        %v343 = vadd.f32 %v252, %v342
        %v344 = vpop.f32.mrb[0].mxu0
        %345 = vmatprep.mubr.f32.mxu0 0.0
        %346 = vmatmul.mubr.f32.gmra.mrb[0].mxu0 %v264
        %v347 = vpop.f32.mrb[0].mxu0
        %v348 = vadd.f32 %v252, %v347
        %v349 = vpop.f32.mrb[0].mxu0
        %350 = vdwg.mxu0
        %v351 = vmax.f32 %v333, 0.0
        %v352 = vmax.f32 %v338, 0.0
        %v353 = vmax.f32 %v343, 0.0
        %v354 = vmax.f32 %v348, 0.0
        %355 = vadd.xlane.f32.xlu0 %v351
        %v356 = vpop.xlane.xlu0 %355
        %357 = vadd.xlane.f32.xlu0 %v352
        %v358 = vpop.xlane.xlu0 %357
        %359 = vadd.xlane.f32.xlu0 %v353
        %v360 = vpop.xlane.xlu0 %359
        %361 = vadd.xlane.f32.xlu0 %v354
        %v362 = vpop.xlane.xlu0 %361
        %v363 = vmul.f32 %v356, 0.03125
        %v364 = vmul.f32 %v358, 0.03125
        %v365 = vmul.f32 %v360, 0.03125
        %v366 = vmul.f32 %v362, 0.03125
        %v367 = vmul.f32 %v351, %v351
        %v368 = vmul.f32 %v352, %v352
        %v369 = vmul.f32 %v353, %v353
        %v370 = vmul.f32 %v354, %v354
        %371 = vadd.xlane.f32.xlu0 %v367
        %v372 = vpop.xlane.xlu0 %371
        %373 = vadd.xlane.f32.xlu0 %v368
        %v374 = vpop.xlane.xlu0 %373
        %375 = vadd.xlane.f32.xlu0 %v369
        %v376 = vpop.xlane.xlu0 %375
        %377 = vadd.xlane.f32.xlu0 %v370
        %v378 = vpop.xlane.xlu0 %377
        %v379 = vmul.f32 %v372, 0.03125
        %v380 = vmul.f32 %v374, 0.03125
        %v381 = vmul.f32 %v376, 0.03125
        %v382 = vmul.f32 %v378, 0.03125
        %v383 = vmul.f32 %v363, %v363
        %v384 = vmul.f32 %v364, %v364
        %v385 = vmul.f32 %v365, %v365
        %v386 = vmul.f32 %v366, %v366
        %v387 = vsub.f32 %v379, %v383
        %v388 = vsub.f32 %v380, %v384
        %v389 = vsub.f32 %v381, %v385
        %v390 = vsub.f32 %v382, %v386
        %v391 = vmax.f32 %v387, 0.0
        %v392 = vmax.f32 %v388, 0.0
        %v393 = vmax.f32 %v389, 0.0
        %v394 = vmax.f32 %v390, 0.0
        %v395 = vsub.f32 %v351, %v363
        %v396 = vsub.f32 %v352, %v364
        %v397 = vsub.f32 %v353, %v365
        %v398 = vsub.f32 %v354, %v366
        %v399 = vadd.f32 %v391, 1e-05
        %v400 = vadd.f32 %v392, 1e-05
        %v401 = vadd.f32 %v393, 1e-05
        %v402 = vadd.f32 %v394, 1e-05
        %v403 = vrsqrt.pop %v399
        %v404 = vrsqrt.pop %v400
        %v405 = vrsqrt.pop %v401
        %v406 = vrsqrt.pop %v402
        %v407 = vmul.f32 %v395, %v403
        %v408 = vmul.f32 %v396, %v404
        %v409 = vmul.f32 %v397, %v405
        %v410 = vmul.f32 %v398, %v406
        %v411 = vlaneseq
        %v412 = vshrl.u32 %v411, 7
        %v413 = vsub.s32 1, %v412
        %v414 = vrot.slane %v248, %v413
        %v415 = vmul.f32 %v407, %v414
        %v416 = vmul.f32 %v408, %v414
        %v417 = vmul.f32 %v409, %v414
        %v418 = vmul.f32 %v410, %v414
        %v419 = vlaneseq
        %v420 = vshrl.u32 %v419, 7
        %v421 = vsub.s32 2, %v420
        %v422 = vrot.slane %v248, %v421
        %v423 = vadd.f32 %v415, %v422
        %v424 = vadd.f32 %v416, %v422
        %v425 = vadd.f32 %v417, %v422
        %v426 = vadd.f32 %v418, %v422
        %v427 = vld [vmem:[#allocation2] sm:$0xff]
        %v428 = vld [vmem:[#allocation2 + $0x8] sm:$0xff]
        %v429 = vld [vmem:[#allocation2 + $0x10] sm:$0xff]
        %v430 = vld [vmem:[#allocation2 + $0x18] sm:$0xff]
        %v431 = vld [vmem:[#allocation2 + $0x20] sm:$0xff]
        %v432 = vld [vmem:[#allocation2 + $0x28] sm:$0xff]
        %v433 = vld [vmem:[#allocation2 + $0x30] sm:$0xff]
        %v434 = vld [vmem:[#allocation2 + $0x38] sm:$0xff]
        %v435 = vld [vmem:[#allocation2 + $0x40] sm:$0xff]
        %v436 = vld [vmem:[#allocation2 + $0x48] sm:$0xff]
        %v437 = vld [vmem:[#allocation2 + $0x50] sm:$0xff]
        %v438 = vld [vmem:[#allocation2 + $0x58] sm:$0xff]
        %v439 = vld [vmem:[#allocation2 + $0x60] sm:$0xff]
        %v440 = vld [vmem:[#allocation2 + $0x68] sm:$0xff]
        %v441 = vld [vmem:[#allocation2 + $0x70] sm:$0xff]
        %v442 = vld [vmem:[#allocation2 + $0x78] sm:$0xff]
        %v443 = vld [vmem:[%s4] sm:$0x7]
        %v444 = vlaneseq
        %v445 = vshrl.u32 %v444, 7
        %v446 = vsub.s32 0, %v445
        %v447 = vrot.slane %v443, %v446
        %448 = vmatprep.subr.mxu0 0.0
        %449 = vmatpush1.msra.mxu0 %v427
        %450 = vmatprep.subr.mxu0 0.0
        %451 = vmatpush1.msra.mxu0 %v428
        %452 = vmatprep.subr.mxu0 0.0
        %453 = vmatpush1.msra.mxu0 %v429
        %454 = vmatprep.subr.mxu0 0.0
        %455 = vmatpush1.msra.mxu0 %v430
        %456 = vmatprep.subr.mxu0 0.0
        %457 = vmatpush1.msra.mxu0 %v431
        %458 = vmatprep.subr.mxu0 0.0
        %459 = vmatpush1.msra.mxu0 %v432
        %460 = vmatprep.subr.mxu0 0.0
        %461 = vmatpush1.msra.mxu0 %v433
        %462 = vmatprep.subr.mxu0 0.0
        %463 = vmatpush1.msra.mxu0 %v434
        %464 = vmatprep.subr.mxu0 0.0
        %465 = vmatpush1.msra.mxu0 %v435
        %466 = vmatprep.subr.mxu0 0.0
        %467 = vmatpush1.msra.mxu0 %v436
        %468 = vmatprep.subr.mxu0 0.0
        %469 = vmatpush1.msra.mxu0 %v437
        %470 = vmatprep.subr.mxu0 0.0
        %471 = vmatpush1.msra.mxu0 %v438
        %472 = vmatprep.subr.mxu0 0.0
        %473 = vmatpush1.msra.mxu0 %v439
        %474 = vmatprep.subr.mxu0 0.0
        %475 = vmatpush1.msra.mxu0 %v440
        %476 = vmatprep.subr.mxu0 0.0
        %477 = vmatpush1.msra.mxu0 %v441
        %478 = vmatprep.subr.mxu0 0.0
        %479 = vmatpush1.msra.mxu0 %v442
        %480 = vmatprep.subr.mxu0 0.0
        %481 = vmatpush1.msra.mxu0 0.0
        %482 = vmatprep.subr.mxu0 0.0
        %483 = vmatpush1.msra.mxu0 0.0
        %484 = vmatprep.subr.mxu0 0.0
        %485 = vmatpush1.msra.mxu0 0.0
        %486 = vmatprep.subr.mxu0 0.0
        %487 = vmatpush1.msra.mxu0 0.0
        %488 = vmatprep.subr.mxu0 0.0
        %489 = vmatpush1.msra.mxu0 0.0
        %490 = vmatprep.subr.mxu0 0.0
        %491 = vmatpush1.msra.mxu0 0.0
        %492 = vmatprep.subr.mxu0 0.0
        %493 = vmatpush1.msra.mxu0 0.0
        %494 = vmatprep.subr.mxu0 0.0
        %495 = vmatpush1.msra.mxu0 0.0
        %496 = vmatprep.subr.mxu0 0.0
        %497 = vmatpush1.msra.mxu0 0.0
        %498 = vmatprep.subr.mxu0 0.0
        %499 = vmatpush1.msra.mxu0 0.0
        %500 = vmatprep.subr.mxu0 0.0
        %501 = vmatpush1.msra.mxu0 0.0
        %502 = vmatprep.subr.mxu0 0.0
        %503 = vmatpush1.msra.mxu0 0.0
        %504 = vmatprep.subr.mxu0 0.0
        %505 = vmatpush1.msra.mxu0 0.0
        %506 = vmatprep.subr.mxu0 0.0
        %507 = vmatpush1.msra.mxu0 0.0
        %508 = vmatprep.subr.mxu0 0.0
        %509 = vmatpush1.msra.mxu0 0.0
        %510 = vmatprep.subr.mxu0 0.0
        %511 = vmatpush1.msra.mxu0 0.0
        %512 = vmatprep.mubr.f32.mxu0 0.0
        %513 = vmatmul.mubr.f32.gmra.mrb[0].mxu0 %v423
        %v514 = vpop.f32.mrb[0].mxu0
        %v515 = vadd.f32 %v447, %v514
        %v516 = vpop.f32.mrb[0].mxu0
        %517 = vmatprep.mubr.f32.mxu0 0.0
        %518 = vmatmul.mubr.f32.gmra.mrb[0].mxu0 %v424
        %v519 = vpop.f32.mrb[0].mxu0
        %v520 = vadd.f32 %v447, %v519
        %v521 = vpop.f32.mrb[0].mxu0
        %522 = vmatprep.mubr.f32.mxu0 0.0
        %523 = vmatmul.mubr.f32.gmra.mrb[0].mxu0 %v425
        %v524 = vpop.f32.mrb[0].mxu0
        %v525 = vadd.f32 %v447, %v524
        %v526 = vpop.f32.mrb[0].mxu0
        %527 = vmatprep.mubr.f32.mxu0 0.0
        %528 = vmatmul.mubr.f32.gmra.mrb[0].mxu0 %v426
        %v529 = vpop.f32.mrb[0].mxu0
        %v530 = vadd.f32 %v447, %v529
        %v531 = vpop.f32.mrb[0].mxu0
        %532 = vdwg.mxu0
        %v533 = vmax.f32 %v515, 0.0
        %v534 = vmax.f32 %v520, 0.0
        %v535 = vmax.f32 %v525, 0.0
        %v536 = vmax.f32 %v530, 0.0
        %537 = vadd.xlane.f32.xlu0 %v533
        %v538 = vpop.xlane.xlu0 %537
        %539 = vadd.xlane.f32.xlu0 %v534
        %v540 = vpop.xlane.xlu0 %539
        %541 = vadd.xlane.f32.xlu0 %v535
        %v542 = vpop.xlane.xlu0 %541
        %543 = vadd.xlane.f32.xlu0 %v536
        %v544 = vpop.xlane.xlu0 %543
        %v545 = vmul.f32 %v538, 0.03125
        %v546 = vmul.f32 %v540, 0.03125
        %v547 = vmul.f32 %v542, 0.03125
        %v548 = vmul.f32 %v544, 0.03125
        %v549 = vmul.f32 %v533, %v533
        %v550 = vmul.f32 %v534, %v534
        %v551 = vmul.f32 %v535, %v535
        %v552 = vmul.f32 %v536, %v536
        %553 = vadd.xlane.f32.xlu0 %v549
        %v554 = vpop.xlane.xlu0 %553
        %555 = vadd.xlane.f32.xlu0 %v550
        %v556 = vpop.xlane.xlu0 %555
        %557 = vadd.xlane.f32.xlu0 %v551
        %v558 = vpop.xlane.xlu0 %557
        %559 = vadd.xlane.f32.xlu0 %v552
        %v560 = vpop.xlane.xlu0 %559
        %v561 = vmul.f32 %v554, 0.03125
        %v562 = vmul.f32 %v556, 0.03125
        %v563 = vmul.f32 %v558, 0.03125
        %v564 = vmul.f32 %v560, 0.03125
        %v565 = vmul.f32 %v545, %v545
        %v566 = vmul.f32 %v546, %v546
        %v567 = vmul.f32 %v547, %v547
        %v568 = vmul.f32 %v548, %v548
        %v569 = vsub.f32 %v561, %v565
        %v570 = vsub.f32 %v562, %v566
        %v571 = vsub.f32 %v563, %v567
        %v572 = vsub.f32 %v564, %v568
        %v573 = vmax.f32 %v569, 0.0
        %v574 = vmax.f32 %v570, 0.0
        %v575 = vmax.f32 %v571, 0.0
        %v576 = vmax.f32 %v572, 0.0
        %v577 = vsub.f32 %v533, %v545
        %v578 = vsub.f32 %v534, %v546
        %v579 = vsub.f32 %v535, %v547
        %v580 = vsub.f32 %v536, %v548
        %v581 = vadd.f32 %v573, 1e-05
        %v582 = vadd.f32 %v574, 1e-05
        %v583 = vadd.f32 %v575, 1e-05
        %v584 = vadd.f32 %v576, 1e-05
        %v585 = vrsqrt.pop %v581
        %v586 = vrsqrt.pop %v582
        %v587 = vrsqrt.pop %v583
        %v588 = vrsqrt.pop %v584
        %v589 = vmul.f32 %v577, %v585
        %v590 = vmul.f32 %v578, %v586
        %v591 = vmul.f32 %v579, %v587
        %v592 = vmul.f32 %v580, %v588
        %v593 = vlaneseq
        %v594 = vshrl.u32 %v593, 7
        %v595 = vsub.s32 1, %v594
        %v596 = vrot.slane %v443, %v595
        %v597 = vmul.f32 %v589, %v596
        %v598 = vmul.f32 %v590, %v596
        %v599 = vmul.f32 %v591, %v596
        %v600 = vmul.f32 %v592, %v596
        %v601 = vlaneseq
        %v602 = vshrl.u32 %v601, 7
        %v603 = vsub.s32 2, %v602
        %v604 = vrot.slane %v443, %v603
        %v605 = vadd.f32 %v597, %v604
        %v606 = vadd.f32 %v598, %v604
        %v607 = vadd.f32 %v599, %v604
        %v608 = vadd.f32 %v600, %v604
        %s609 = scalar_lea.vmem [#allocation2], 128
        %v610 = vld [vmem:[%s609] sm:$0xff]
        %v611 = vld [vmem:[%s609 + $0x8] sm:$0xff]
        %v612 = vld [vmem:[%s609 + $0x10] sm:$0xff]
        %v613 = vld [vmem:[%s609 + $0x18] sm:$0xff]
        %v614 = vld [vmem:[%s609 + $0x20] sm:$0xff]
        %v615 = vld [vmem:[%s609 + $0x28] sm:$0xff]
        %v616 = vld [vmem:[%s609 + $0x30] sm:$0xff]
        %v617 = vld [vmem:[%s609 + $0x38] sm:$0xff]
        %v618 = vld [vmem:[%s609 + $0x40] sm:$0xff]
        %v619 = vld [vmem:[%s609 + $0x48] sm:$0xff]
        %v620 = vld [vmem:[%s609 + $0x50] sm:$0xff]
        %v621 = vld [vmem:[%s609 + $0x58] sm:$0xff]
        %v622 = vld [vmem:[%s609 + $0x60] sm:$0xff]
        %v623 = vld [vmem:[%s609 + $0x68] sm:$0xff]
        %v624 = vld [vmem:[%s609 + $0x70] sm:$0xff]
        %v625 = vld [vmem:[%s609 + $0x78] sm:$0xff]
        %s626 = scalar_lea.vmem %s4, 4
        %v627 = vld [vmem:[%s626] sm:$0x7]
        %v628 = vlaneseq
        %v629 = vshrl.u32 %v628, 7
        %v630 = vsub.s32 0, %v629
        %v631 = vrot.slane %v627, %v630
        %632 = vmatprep.subr.mxu0 0.0
        %633 = vmatpush1.msra.mxu0 %v610
        %634 = vmatprep.subr.mxu0 0.0
        %635 = vmatpush1.msra.mxu0 %v611
        %636 = vmatprep.subr.mxu0 0.0
        %637 = vmatpush1.msra.mxu0 %v612
        %638 = vmatprep.subr.mxu0 0.0
        %639 = vmatpush1.msra.mxu0 %v613
        %640 = vmatprep.subr.mxu0 0.0
        %641 = vmatpush1.msra.mxu0 %v614
        %642 = vmatprep.subr.mxu0 0.0
        %643 = vmatpush1.msra.mxu0 %v615
        %644 = vmatprep.subr.mxu0 0.0
        %645 = vmatpush1.msra.mxu0 %v616
        %646 = vmatprep.subr.mxu0 0.0
        %647 = vmatpush1.msra.mxu0 %v617
        %648 = vmatprep.subr.mxu0 0.0
        %649 = vmatpush1.msra.mxu0 %v618
        %650 = vmatprep.subr.mxu0 0.0
        %651 = vmatpush1.msra.mxu0 %v619
        %652 = vmatprep.subr.mxu0 0.0
        %653 = vmatpush1.msra.mxu0 %v620
        %654 = vmatprep.subr.mxu0 0.0
        %655 = vmatpush1.msra.mxu0 %v621
        %656 = vmatprep.subr.mxu0 0.0
        %657 = vmatpush1.msra.mxu0 %v622
        %658 = vmatprep.subr.mxu0 0.0
        %659 = vmatpush1.msra.mxu0 %v623
        %660 = vmatprep.subr.mxu0 0.0
        %661 = vmatpush1.msra.mxu0 %v624
        %662 = vmatprep.subr.mxu0 0.0
        %663 = vmatpush1.msra.mxu0 %v625
        %664 = vmatprep.subr.mxu0 0.0
        %665 = vmatpush1.msra.mxu0 0.0
        %666 = vmatprep.subr.mxu0 0.0
        %667 = vmatpush1.msra.mxu0 0.0
        %668 = vmatprep.subr.mxu0 0.0
        %669 = vmatpush1.msra.mxu0 0.0
        %670 = vmatprep.subr.mxu0 0.0
        %671 = vmatpush1.msra.mxu0 0.0
        %672 = vmatprep.subr.mxu0 0.0
        %673 = vmatpush1.msra.mxu0 0.0
        %674 = vmatprep.subr.mxu0 0.0
        %675 = vmatpush1.msra.mxu0 0.0
        %676 = vmatprep.subr.mxu0 0.0
        %677 = vmatpush1.msra.mxu0 0.0
        %678 = vmatprep.subr.mxu0 0.0
        %679 = vmatpush1.msra.mxu0 0.0
        %680 = vmatprep.subr.mxu0 0.0
        %681 = vmatpush1.msra.mxu0 0.0
        %682 = vmatprep.subr.mxu0 0.0
        %683 = vmatpush1.msra.mxu0 0.0
        %684 = vmatprep.subr.mxu0 0.0
        %685 = vmatpush1.msra.mxu0 0.0
        %686 = vmatprep.subr.mxu0 0.0
        %687 = vmatpush1.msra.mxu0 0.0
        %688 = vmatprep.subr.mxu0 0.0
        %689 = vmatpush1.msra.mxu0 0.0
        %690 = vmatprep.subr.mxu0 0.0
        %691 = vmatpush1.msra.mxu0 0.0
        %692 = vmatprep.subr.mxu0 0.0
        %693 = vmatpush1.msra.mxu0 0.0
        %694 = vmatprep.subr.mxu0 0.0
        %695 = vmatpush1.msra.mxu0 0.0
        %696 = vmatprep.mubr.f32.mxu0 0.0
        %697 = vmatmul.mubr.f32.gmra.mrb[0].mxu0 %v605
        %v698 = vpop.f32.mrb[0].mxu0
        %v699 = vadd.f32 %v631, %v698
        %v700 = vpop.f32.mrb[0].mxu0
        %701 = vmatprep.mubr.f32.mxu0 0.0
        %702 = vmatmul.mubr.f32.gmra.mrb[0].mxu0 %v606
        %v703 = vpop.f32.mrb[0].mxu0
        %v704 = vadd.f32 %v631, %v703
        %v705 = vpop.f32.mrb[0].mxu0
        %706 = vmatprep.mubr.f32.mxu0 0.0
        %707 = vmatmul.mubr.f32.gmra.mrb[0].mxu0 %v607
        %v708 = vpop.f32.mrb[0].mxu0
        %v709 = vadd.f32 %v631, %v708
        %v710 = vpop.f32.mrb[0].mxu0
        %711 = vmatprep.mubr.f32.mxu0 0.0
        %712 = vmatmul.mubr.f32.gmra.mrb[0].mxu0 %v608
        %v713 = vpop.f32.mrb[0].mxu0
        %v714 = vadd.f32 %v631, %v713
        %v715 = vpop.f32.mrb[0].mxu0
        %716 = vdwg.mxu0
        %v717 = vmax.f32 %v699, 0.0
        %v718 = vmax.f32 %v704, 0.0
        %v719 = vmax.f32 %v709, 0.0
        %v720 = vmax.f32 %v714, 0.0
        %721 = vadd.xlane.f32.xlu0 %v717
        %v722 = vpop.xlane.xlu0 %721
        %723 = vadd.xlane.f32.xlu0 %v718
        %v724 = vpop.xlane.xlu0 %723
        %725 = vadd.xlane.f32.xlu0 %v719
        %v726 = vpop.xlane.xlu0 %725
        %727 = vadd.xlane.f32.xlu0 %v720
        %v728 = vpop.xlane.xlu0 %727
        %v729 = vmul.f32 %v722, 0.03125
        %v730 = vmul.f32 %v724, 0.03125
        %v731 = vmul.f32 %v726, 0.03125
        %v732 = vmul.f32 %v728, 0.03125
        %v733 = vmul.f32 %v717, %v717
        %v734 = vmul.f32 %v718, %v718
        %v735 = vmul.f32 %v719, %v719
        %v736 = vmul.f32 %v720, %v720
        %737 = vadd.xlane.f32.xlu0 %v733
        %v738 = vpop.xlane.xlu0 %737
        %739 = vadd.xlane.f32.xlu0 %v734
        %v740 = vpop.xlane.xlu0 %739
        %741 = vadd.xlane.f32.xlu0 %v735
        %v742 = vpop.xlane.xlu0 %741
        %743 = vadd.xlane.f32.xlu0 %v736
        %v744 = vpop.xlane.xlu0 %743
        %v745 = vmul.f32 %v738, 0.03125
        %v746 = vmul.f32 %v740, 0.03125
        %v747 = vmul.f32 %v742, 0.03125
        %v748 = vmul.f32 %v744, 0.03125
        %v749 = vmul.f32 %v729, %v729
        %v750 = vmul.f32 %v730, %v730
        %v751 = vmul.f32 %v731, %v731
        %v752 = vmul.f32 %v732, %v732
        %v753 = vsub.f32 %v745, %v749
        %v754 = vsub.f32 %v746, %v750
        %v755 = vsub.f32 %v747, %v751
        %v756 = vsub.f32 %v748, %v752
        %v757 = vmax.f32 %v753, 0.0
        %v758 = vmax.f32 %v754, 0.0
        %v759 = vmax.f32 %v755, 0.0
        %v760 = vmax.f32 %v756, 0.0
        %v761 = vsub.f32 %v717, %v729
        %v762 = vsub.f32 %v718, %v730
        %v763 = vsub.f32 %v719, %v731
        %v764 = vsub.f32 %v720, %v732
        %v765 = vadd.f32 %v757, 1e-05
        %v766 = vadd.f32 %v758, 1e-05
        %v767 = vadd.f32 %v759, 1e-05
        %v768 = vadd.f32 %v760, 1e-05
        %v769 = vrsqrt.pop %v765
        %v770 = vrsqrt.pop %v766
        %v771 = vrsqrt.pop %v767
        %v772 = vrsqrt.pop %v768
        %v773 = vmul.f32 %v761, %v769
        %v774 = vmul.f32 %v762, %v770
        %v775 = vmul.f32 %v763, %v771
        %v776 = vmul.f32 %v764, %v772
        %v777 = vlaneseq
        %v778 = vshrl.u32 %v777, 7
        %v779 = vsub.s32 1, %v778
        %v780 = vrot.slane %v627, %v779
        %v781 = vmul.f32 %v773, %v780
        %v782 = vmul.f32 %v774, %v780
        %v783 = vmul.f32 %v775, %v780
        %v784 = vmul.f32 %v776, %v780
        %v785 = vlaneseq
        %v786 = vshrl.u32 %v785, 7
        %v787 = vsub.s32 2, %v786
        %v788 = vrot.slane %v627, %v787
        %v789 = vadd.f32 %v781, %v788
        %v790 = vadd.f32 %v782, %v788
        %v791 = vadd.f32 %v783, %v788
        %v792 = vadd.f32 %v784, %v788
        %793 = vst [vmem:[%s233] sm:$0xff] %v789
        %794 = vst [vmem:[%s233 + $0x8] sm:$0xff] %v790
        %795 = vst [vmem:[%s233 + $0x10] sm:$0xff] %v791
        %796 = vst [vmem:[%s233 + $0x18] sm:$0xff] %v792
        %s797 = sand.u32 %s138, 1
        %s798 = scalar_lea.sflag [#allocation4], %s797
        %s799 = sand.u32 %s138, 1
        %s800 = smul.addr %s799, 32
        %s801 = scalar_lea.vmem [#allocation5], %s800
        // Predicated region
        $region45: #{tpu_custom_call.1} parent=39 // pred_check
          %p802 = pneg %p148
        $region46: #{tpu_custom_call.1} parent=39 // pred_check_branch
          %804 = sbr.rel (%p802) target = $region48
        $region47: #{tpu_custom_call.1} parent=39 // pred_region
          %s805 = smul.u32 4, %s20
          %s807 = ssub.s32 512, 512
          %808 = vsyncadd %s798, %s807
          %s809 = smul.addr %s805, 128
          %s810 = scalar_lea.hbm %s5, %s809
          %s811 = sshll.u32 %s801, 4
          %s812 = int_to_ptr.vmem [resolvable:$true] %s811
          %817 = dma.vmem_to_hbm [thread:$0]  %s812, 512, %s810, %s798, 128, 128, 8
        $region48: #{tpu_custom_call.1} parent=39 // pred_fallthru
          _
      $region40: #{tpu_custom_call.1} parent=5 // pred_fallthru
        _
      %p818 = scmp.le.s32.totalorder 2, %s15
      // Predicated region
      $region49: #{tpu_custom_call.1} parent=5 // pred_check
        %p819 = pneg %p818
      $region50: #{tpu_custom_call.1} parent=5 // pred_check_branch
        %821 = sbr.rel (%p819) target = $region52
      $region51: #{tpu_custom_call.1} parent=5 // pred_region
        %s822 = ssub.s32 %s15, 2
        // Predicated region
        $region53: #{tpu_custom_call.1} parent=51 // pred_check
          %p823 = pneg %p154
        $region54: #{tpu_custom_call.1} parent=51 // pred_check_branch
          %825 = sbr.rel (%p823) target = $region56
        $region55: #{tpu_custom_call.1} parent=51 // pred_region
          %s826 = sand.u32 %s139, 1
          %s827 = scalar_lea.sflag [#allocation4], %s826
          %s828 = sand.u32 %s139, 1
          %s829 = smul.addr %s828, 32
          %s830 = scalar_lea.vmem [#allocation5], %s829
          %831 = dma.done %s827, 512
        $region56: #{tpu_custom_call.1} parent=51 // pred_fallthru
          _
      $region52: #{tpu_custom_call.1} parent=5 // pred_fallthru
        _
    $region6: #{tpu_custom_call.1} parent=1 // loop_footer
      %s19 = sadd.s32 1, %s15
    $region7: #{tpu_custom_call.1} parent=1 // loop_footer_branch
      %14 = sbr.rel target = $region3
    $region8: #{tpu_custom_call.1} parent=1 // loop_exit
      _
    %832 = vsyncpa [#allocation3], 1
    %s833 = scalar_lea.sflag [#allocation3], 1
    %834 = vsyncpa %s833, 1
    %835 = vsyncpa [#allocation4], 1
    %s836 = scalar_lea.sflag [#allocation4], 1
    %837 = vsyncpa %s836, 1

</llo_original>
